<compile_context>
chip_gen: v5e
topology: v5e:2x2
jax: 0.10.0
libtpu: 0.0.40
codegen_flags: <defaults>
</compile_context>

<pallas_src>
import jax
import jax.numpy as jnp
from jax import lax
from jax.experimental import pallas as pl
from jax.experimental.pallas import tpu as pltpu

EPS = 1e-5          # PyTorch BatchNorm1d default eps
D1, D2, D3 = 16, 12, 8
D2_PAD = 16         # layer-2 slice padded to a sublane multiple in the augmented weight


# --------------------------------------------------------------------------- #
# Kernel
# --------------------------------------------------------------------------- #
def pyramid_kernel(
    x_ref,                       # [Din, tile_b]   (batch on the lane axis)
    w1t_ref, b1_ref,             # [16, Din], [16, 1]
    w2aug_ref, b2_ref,           # [16+F, 16], [12, 1]
    w3aug_ref, b3_ref,           # [8+F, 12],  [8, 1]
    wf3t_ref, bf_ref,            # [F, 8], [F, 1]
    out_ref,                     # [F, tile_b]
):
    xT = x_ref[...]

    # layer1: z1 = W1' @ x + b1 ; ReLU  (BN folded; Dropout = eval identity)
    x1 = jnp.maximum(
        jnp.dot(w1t_ref[...], xT, preferred_element_type=jnp.float32) + b1_ref[...],
        0.0)                                                     # [16, tile_b]

    # layer2 + fusion(x1) in ONE matmul:
    #   rows [0:12]        -> layer2 pre-activation
    #   rows [16:16+F]     -> wf1^T @ x1   (fusion contribution of x1)
    y2 = jnp.dot(w2aug_ref[...], x1, preferred_element_type=jnp.float32)
    x2 = jnp.maximum(y2[:D2, :] + b2_ref[...], 0.0)              # [12, tile_b]
    acc = y2[D2_PAD:, :]                                         # [F,  tile_b]

    # layer3 + fusion(x2) in ONE matmul:
    #   rows [0:8]   -> layer3 pre-activation
    #   rows [8:8+F] -> wf2^T @ x2
    y3 = jnp.dot(w3aug_ref[...], x2, preferred_element_type=jnp.float32)
    x3 = jnp.maximum(y3[:D3, :] + b3_ref[...], 0.0)              # [8, tile_b]
    acc = acc + y3[D3:, :]

    # final fusion term + folded (affine=False) BN bias
    zf = acc + jnp.dot(wf3t_ref[...], x3, preferred_element_type=jnp.float32) + bf_ref[...]
    out_ref[...] = zf.astype(out_ref.dtype)


# --------------------------------------------------------------------------- #
# Wrapper
# --------------------------------------------------------------------------- #
def _round_up(n, m):
    return ((n + m - 1) // m) * m


def _choose_tile(B, input_dim, max_tile=2048, lane=128):
    """Adaptive batch tile: lane-multiple, bounded VMEM, >=2 grid steps when possible."""
    # keep the per-step x tile <= ~4 MiB so double-buffering never stresses VMEM
    cap = max(lane, (4 * 1024 * 1024) // max(1, input_dim * 4))
    max_tile = min(max_tile, _round_up(cap, lane))
    bp_min = _round_up(B, lane)
    n_tiles = max(1, -(-bp_min // max_tile))
    if bp_min >= 2 * lane:
        n_tiles = max(n_tiles, 2)        # give v7x's second TensorCore work
    tile_b = _round_up(-(-bp_min // n_tiles), lane)
    bp = _round_up(bp_min, tile_b)
    return tile_b, bp


def pyramid_network(x, folded, *, max_tile=2048):
    """x: [B, input_dim] (f32 or bf16).  Returns [B, feature_dim] float32."""
    B, input_dim = x.shape
    feature_dim = folded["bf"].shape[0]
    tile_b, Bp = _choose_tile(B, input_dim, max_tile)

    xT = x.T                                   # batch -> MXU lane axis (one XLA transpose)
    if Bp != B:
        xT = jnp.pad(xT, ((0, 0), (0, Bp - B)))

    weights = (
        folded["w1t"], folded["b1"],
        folded["w2aug_t"], folded["b2"],
        folded["w3aug_t"], folded["b3"],
        folded["wf3t"], folded["bf"],
    )

    # xT / outT stream through VMEM (double-buffered); every weight/bias uses a
    # constant index_map so it stays VMEM-resident across grid steps.
    x_spec = pl.BlockSpec((input_dim, tile_b), lambda i: (0, i))
    out_spec = pl.BlockSpec((feature_dim, tile_b), lambda i: (0, i))
    w_specs = [pl.BlockSpec(w.shape, lambda i: (0, 0)) for w in weights]

    outT = pl.pallas_call(
        pyramid_kernel,
        out_shape=jax.ShapeDtypeStruct((feature_dim, Bp), jnp.float32),
        grid=(Bp // tile_b,),
        in_specs=[x_spec] + w_specs,
        out_specs=out_spec,
        compiler_params=pltpu.CompilerParams(
            dimension_semantics=("parallel",),        # megacore sharding on v7x
            vmem_limit_bytes=32 * 1024 * 1024,        # safe on v5e/v6e/v7x
        ),
    )(xT, *weights)

    out = outT.T
    return out[:B] if Bp != B else out


# --------------------------------------------------------------------------- #
# Parameter construction (matches the PyTorch module's shapes) + folding
# --------------------------------------------------------------------------- #
def init_params(key, input_dim, feature_dim):
    """Raw module parameters.  Linear weights stored pre-transposed [in, out];
    biases / BN vectors as [1, out]."""
    dims = [(input_dim, D1), (D1, D2), (D2, D3)]
    params = {}
    keys = jax.random.split(key, 16)
    ki = 0

    def lin(shape, k):
        bound = 1.0 / jnp.sqrt(shape[0])
        return jax.random.uniform(k, shape, jnp.float32, -bound, bound)

    for li, (din, dout) in enumerate(dims, start=1):
        params[f"w{li}"] = lin((din, dout), keys[ki]); ki += 1
        params[f"b{li}"] = lin((1, dout), keys[ki]); ki += 1
        params[f"g{li}"] = 1.0 + 0.1 * jax.random.normal(keys[ki], (1, dout), jnp.float32); ki += 1
        params[f"be{li}"] = 0.1 * jax.random.normal(keys[ki], (1, dout), jnp.float32); ki += 1
        params[f"m{li}"] = 0.05 * jnp.arange(dout, dtype=jnp.float32).reshape(1, dout)
        params[f"v{li}"] = 1.0 + 0.01 * jnp.arange(dout, dtype=jnp.float32).reshape(1, dout)

    fin = D1 + D2 + D3
    params["wf"] = lin((fin, feature_dim), keys[ki]); ki += 1
    params["bf"] = lin((1, feature_dim), keys[ki]); ki += 1
    params["mf"] = 0.02 * jnp.arange(feature_dim, dtype=jnp.float32).reshape(1, feature_dim)
    params["vf"] = 1.0 + 0.02 * jnp.arange(feature_dim, dtype=jnp.float32).reshape(1, feature_dim)
    return params


def fold_params(p, weight_dtype=jnp.float32):
    """One-time constant folds:
       * eval-mode BatchNorm folded into the Linear weights/biases,
       * fusion weight split along the concat axis (16/12/8) and merged into
         the layer-2 / layer-3 weights (augmented columns) so x1 and x2 each
         hit the MXU only once,
       * everything transposed to the [dout, din] orientation used by the kernel."""
    w, b = {}, {}
    for li in (1, 2, 3):
        scale = p[f"g{li}"] * lax.rsqrt(p[f"v{li}"] + EPS)                     # [1, dout]
        w[li] = p[f"w{li}"] * scale                                            # [din, dout]
        b[li] = (p[f"b{li}"] - p[f"m{li}"]) * scale + p[f"be{li}"]             # [1, dout]

    sf = lax.rsqrt(p["vf"] + EPS)                                              # [1, F] (affine=False)
    wf = p["wf"] * sf                                                          # [36, F]
    wf1, wf2, wf3 = wf[:D1], wf[D1:D1 + D2], wf[D1 + D2:]
    bf = (p["bf"] - p["mf"]) * sf                                              # [1, F]

    folded = {}
    folded["w1t"] = w[1].T.astype(weight_dtype)                                # [16, Din]
    folded["b1"] = b[1].T.astype(jnp.float32)                                  # [16, 1]

    pad = jnp.zeros((D1, D2_PAD - D2), jnp.float32)
    w2aug = jnp.concatenate([w[2], pad, wf1], axis=1)                          # [16, 16+F]
    folded["w2aug_t"] = w2aug.T.astype(weight_dtype)                           # [16+F, 16]
    folded["b2"] = b[2].T.astype(jnp.float32)                                  # [12, 1]

    w3aug = jnp.concatenate([w[3], wf2], axis=1)                               # [12, 8+F]
    folded["w3aug_t"] = w3aug.T.astype(weight_dtype)                           # [8+F, 12]
    folded["b3"] = b[3].T.astype(jnp.float32)                                  # [8, 1]

    folded["wf3t"] = wf3.T.astype(weight_dtype)                                # [F, 8]
    folded["bf"] = bf.T.astype(jnp.float32)                                    # [F, 1]
    return folded


# --------------------------------------------------------------------------- #
# Pure-JAX reference (un-folded BN math, exactly mirroring the PyTorch module)
# --------------------------------------------------------------------------- #
def reference(x, p):
    def blk(h, w, b, g, be, m, v):
        z = h @ w + b
        z = (z - m) / jnp.sqrt(v + EPS) * g + be
        return jnp.maximum(z, 0.0)

    x1 = blk(x, p["w1"], p["b1"], p["g1"], p["be1"], p["m1"], p["v1"])
    x2 = blk(x1, p["w2"], p["b2"], p["g2"], p["be2"], p["m2"], p["v2"])
    x3 = blk(x2, p["w3"], p["b3"], p["g3"], p["be3"], p["m3"], p["v3"])
    fusion = jnp.concatenate([x1, x2, x3], axis=1)
    zf = fusion @ p["wf"] + p["bf"]
    return (zf - p["mf"]) / jnp.sqrt(p["vf"] + EPS)


if __name__ == "__main__":
    B, INPUT_DIM, FEATURE_DIM = 8, 32, 16

    key = jax.random.PRNGKey(0)
    kx, kp = jax.random.split(key)
    x = jax.random.normal(kx, (B, INPUT_DIM), jnp.float32)
    params = init_params(kp, INPUT_DIM, FEATURE_DIM)

    # f32 weights for the tight reference check; pass weight_dtype=jnp.bfloat16
    # (and a bf16 x) to halve the HBM streams on v5e -- kernel accumulates in f32.
    folded = fold_params(params, weight_dtype=jnp.float32)

    out = pyramid_network(x, folded)
    out = jax.block_until_ready(out)

    ref = reference(x, params)
    assert out.shape == (B, FEATURE_DIM)
    assert jnp.allclose(out, ref, atol=5e-4, rtol=5e-4), "mismatch vs reference"

    print("KERNEL_OK")
</pallas_src>

<mosaic_0001>
module attributes {stable_mosaic.version = 11 : i64} {
  func.func @pyramid_kernel(%arg0: i32, %arg1: memref<32x128xf32, #tpu.memory_space<vmem>>, %arg2: memref<16x32xf32, #tpu.memory_space<vmem>>, %arg3: memref<16x1xf32, #tpu.memory_space<vmem>>, %arg4: memref<32x16xf32, #tpu.memory_space<vmem>>, %arg5: memref<12x1xf32, #tpu.memory_space<vmem>>, %arg6: memref<24x12xf32, #tpu.memory_space<vmem>>, %arg7: memref<8x1xf32, #tpu.memory_space<vmem>>, %arg8: memref<16x8xf32, #tpu.memory_space<vmem>>, %arg9: memref<16x1xf32, #tpu.memory_space<vmem>>, %arg10: memref<16x128xf32, #tpu.memory_space<vmem>>) attributes {dimension_semantics = [#tpu.dimension_semantics<parallel>], iteration_bounds = array<i64: 1>, scalar_prefetch = 0 : i64, scratch_operands = 0 : i64, tpu.core_type = #tpu.core_type<tc>, window_params = [{transform_indices = @transform_0, window_bounds = array<i64: 32, 128>}, {pipeline_mode = #tpu.pipeline_mode<synchronous>, transform_indices = @transform_1, window_bounds = array<i64: 16, 32>}, {pipeline_mode = #tpu.pipeline_mode<synchronous>, transform_indices = @transform_2, window_bounds = array<i64: 16, 1>}, {pipeline_mode = #tpu.pipeline_mode<synchronous>, transform_indices = @transform_3, window_bounds = array<i64: 32, 16>}, {pipeline_mode = #tpu.pipeline_mode<synchronous>, transform_indices = @transform_4, window_bounds = array<i64: 12, 1>}, {pipeline_mode = #tpu.pipeline_mode<synchronous>, transform_indices = @transform_5, window_bounds = array<i64: 24, 12>}, {pipeline_mode = #tpu.pipeline_mode<synchronous>, transform_indices = @transform_6, window_bounds = array<i64: 8, 1>}, {pipeline_mode = #tpu.pipeline_mode<synchronous>, transform_indices = @transform_7, window_bounds = array<i64: 16, 8>}, {pipeline_mode = #tpu.pipeline_mode<synchronous>, transform_indices = @transform_8, window_bounds = array<i64: 16, 1>}, {transform_indices = @transform_9, window_bounds = array<i64: 16, 128>}]} {
    %c0 = arith.constant 0 : index
    %c0_0 = arith.constant 0 : index
    %0 = vector.load %arg1[%c0, %c0_0] : memref<32x128xf32, #tpu.memory_space<vmem>>, vector<32x128xf32>
    %c0_1 = arith.constant 0 : index
    %c0_2 = arith.constant 0 : index
    %1 = vector.load %arg2[%c0_1, %c0_2] : memref<16x32xf32, #tpu.memory_space<vmem>>, vector<16x32xf32>
    %cst = arith.constant dense<0.000000e+00> : vector<16x128xf32>
    %2 = tpu.matmul %1, %0, %cst {dimension_numbers = #tpu.dot_dimension_numbers<[1], [0], [0], [1], [0, 0, 1, 1], [], []>} : vector<16x32xf32>, vector<32x128xf32>, vector<16x128xf32> -> vector<16x128xf32>
    %c0_3 = arith.constant 0 : index
    %c0_4 = arith.constant 0 : index
    %3 = vector.load %arg3[%c0_3, %c0_4] : memref<16x1xf32, #tpu.memory_space<vmem>>, vector<16x1xf32>
    %4 = vector.broadcast %3 : vector<16x1xf32> to vector<16x128xf32>
    %5 = arith.addf %2, %4 : vector<16x128xf32>
    %cst_5 = arith.constant 0.000000e+00 : f32
    %6 = vector.broadcast %cst_5 : f32 to vector<16x128xf32>
    %7 = arith.maximumf %5, %6 : vector<16x128xf32>
    %c0_6 = arith.constant 0 : index
    %c0_7 = arith.constant 0 : index
    %8 = vector.load %arg4[%c0_6, %c0_7] : memref<32x16xf32, #tpu.memory_space<vmem>>, vector<32x16xf32>
    %cst_8 = arith.constant dense<0.000000e+00> : vector<32x128xf32>
    %9 = tpu.matmul %8, %7, %cst_8 {dimension_numbers = #tpu.dot_dimension_numbers<[1], [0], [0], [1], [0, 0, 1, 1], [], []>} : vector<32x16xf32>, vector<16x128xf32>, vector<32x128xf32> -> vector<32x128xf32>
    %10 = vector.extract_strided_slice %9 {offsets = [0, 0], sizes = [12, 128], strides = [1, 1]} : vector<32x128xf32> to vector<12x128xf32>
    %c0_9 = arith.constant 0 : index
    %c0_10 = arith.constant 0 : index
    %11 = vector.load %arg5[%c0_9, %c0_10] : memref<12x1xf32, #tpu.memory_space<vmem>>, vector<12x1xf32>
    %12 = vector.broadcast %11 : vector<12x1xf32> to vector<12x128xf32>
    %13 = arith.addf %10, %12 : vector<12x128xf32>
    %cst_11 = arith.constant 0.000000e+00 : f32
    %14 = vector.broadcast %cst_11 : f32 to vector<12x128xf32>
    %15 = arith.maximumf %13, %14 : vector<12x128xf32>
    %16 = vector.extract_strided_slice %9 {offsets = [16, 0], sizes = [16, 128], strides = [1, 1]} : vector<32x128xf32> to vector<16x128xf32>
    %c0_12 = arith.constant 0 : index
    %c0_13 = arith.constant 0 : index
    %17 = vector.load %arg6[%c0_12, %c0_13] : memref<24x12xf32, #tpu.memory_space<vmem>>, vector<24x12xf32>
    %cst_14 = arith.constant dense<0.000000e+00> : vector<24x128xf32>
    %18 = tpu.matmul %17, %15, %cst_14 {dimension_numbers = #tpu.dot_dimension_numbers<[1], [0], [0], [1], [0, 0, 1, 1], [], []>} : vector<24x12xf32>, vector<12x128xf32>, vector<24x128xf32> -> vector<24x128xf32>
    %19 = vector.extract_strided_slice %18 {offsets = [0, 0], sizes = [8, 128], strides = [1, 1]} : vector<24x128xf32> to vector<8x128xf32>
    %c0_15 = arith.constant 0 : index
    %c0_16 = arith.constant 0 : index
    %20 = vector.load %arg7[%c0_15, %c0_16] : memref<8x1xf32, #tpu.memory_space<vmem>>, vector<8x1xf32>
    %21 = vector.broadcast %20 : vector<8x1xf32> to vector<8x128xf32>
    %22 = arith.addf %19, %21 : vector<8x128xf32>
    %cst_17 = arith.constant 0.000000e+00 : f32
    %23 = vector.broadcast %cst_17 : f32 to vector<8x128xf32>
    %24 = arith.maximumf %22, %23 : vector<8x128xf32>
    %25 = vector.extract_strided_slice %18 {offsets = [8, 0], sizes = [16, 128], strides = [1, 1]} : vector<24x128xf32> to vector<16x128xf32>
    %26 = arith.addf %16, %25 : vector<16x128xf32>
    %c0_18 = arith.constant 0 : index
    %c0_19 = arith.constant 0 : index
    %27 = vector.load %arg8[%c0_18, %c0_19] : memref<16x8xf32, #tpu.memory_space<vmem>>, vector<16x8xf32>
    %cst_20 = arith.constant dense<0.000000e+00> : vector<16x128xf32>
    %28 = tpu.matmul %27, %24, %cst_20 {dimension_numbers = #tpu.dot_dimension_numbers<[1], [0], [0], [1], [0, 0, 1, 1], [], []>} : vector<16x8xf32>, vector<8x128xf32>, vector<16x128xf32> -> vector<16x128xf32>
    %29 = arith.addf %26, %28 : vector<16x128xf32>
    %c0_21 = arith.constant 0 : index
    %c0_22 = arith.constant 0 : index
    %30 = vector.load %arg9[%c0_21, %c0_22] : memref<16x1xf32, #tpu.memory_space<vmem>>, vector<16x1xf32>
    %31 = vector.broadcast %30 : vector<16x1xf32> to vector<16x128xf32>
    %32 = arith.addf %29, %31 : vector<16x128xf32>
    %c0_23 = arith.constant 0 : index
    %c0_24 = arith.constant 0 : index
    %33 = vector.load %arg10[%c0_23, %c0_24] : memref<16x128xf32, #tpu.memory_space<vmem>>, vector<16x128xf32>
    tpu.vector_store %arg10[%c0_23, %c0_24], %32 {strides = array<i32>} : memref<16x128xf32, #tpu.memory_space<vmem>>, vector<16x128xf32>,
    return
  }
  func.func @transform_0(%arg0: i32) -> (i32, i32) {
    %c0_i32 = arith.constant 0 : i32
    %c0_i32_0 = arith.constant 0 : i32
    return %c0_i32, %arg0 : i32, i32
  }
  func.func @transform_1(%arg0: i32) -> (i32, i32) {
    %c0_i32 = arith.constant 0 : i32
    %c0_i32_0 = arith.constant 0 : i32
    %c0_i32_1 = arith.constant 0 : i32
    return %c0_i32, %c0_i32_0 : i32, i32
  }
  func.func @transform_2(%arg0: i32) -> (i32, i32) {
    %c0_i32 = arith.constant 0 : i32
    %c0_i32_0 = arith.constant 0 : i32
    %c0_i32_1 = arith.constant 0 : i32
    return %c0_i32, %c0_i32_0 : i32, i32
  }
  func.func @transform_3(%arg0: i32) -> (i32, i32) {
    %c0_i32 = arith.constant 0 : i32
    %c0_i32_0 = arith.constant 0 : i32
    %c0_i32_1 = arith.constant 0 : i32
    return %c0_i32, %c0_i32_0 : i32, i32
  }
  func.func @transform_4(%arg0: i32) -> (i32, i32) {
    %c0_i32 = arith.constant 0 : i32
    %c0_i32_0 = arith.constant 0 : i32
    %c0_i32_1 = arith.constant 0 : i32
    return %c0_i32, %c0_i32_0 : i32, i32
  }
  func.func @transform_5(%arg0: i32) -> (i32, i32) {
    %c0_i32 = arith.constant 0 : i32
    %c0_i32_0 = arith.constant 0 : i32
    %c0_i32_1 = arith.constant 0 : i32
    return %c0_i32, %c0_i32_0 : i32, i32
  }
  func.func @transform_6(%arg0: i32) -> (i32, i32) {
    %c0_i32 = arith.constant 0 : i32
    %c0_i32_0 = arith.constant 0 : i32
    %c0_i32_1 = arith.constant 0 : i32
    return %c0_i32, %c0_i32_0 : i32, i32
  }
  func.func @transform_7(%arg0: i32) -> (i32, i32) {
    %c0_i32 = arith.constant 0 : i32
    %c0_i32_0 = arith.constant 0 : i32
    %c0_i32_1 = arith.constant 0 : i32
    return %c0_i32, %c0_i32_0 : i32, i32
  }
  func.func @transform_8(%arg0: i32) -> (i32, i32) {
    %c0_i32 = arith.constant 0 : i32
    %c0_i32_0 = arith.constant 0 : i32
    %c0_i32_1 = arith.constant 0 : i32
    return %c0_i32, %c0_i32_0 : i32, i32
  }
  func.func @transform_9(%arg0: i32) -> (i32, i32) {
    %c0_i32 = arith.constant 0 : i32
    %c0_i32_0 = arith.constant 0 : i32
    return %c0_i32, %arg0 : i32, i32
  }
}

</mosaic_0001>

<llo_original>
// kernel: tpu_custom_call.1
$region0: #{tpu_custom_call.1}
  #allocation0 [shape = 'u32[]', space=smem, size = 0x4, offset = 0x4, fixed_abs, tag = 'smem constant byte address 0x4 - core index']
  #allocation1 [shape = 'u32[72,128]{1,0:T(1,128)}', space=vmem, size = 0x9000, scoped, tag = 'internal scratch']
  %s0 = inlined_call_operand.vmem [shape: f32[32,128], index: 0, kind: input, shape index: {}]
  %s1 = inlined_call_operand.vmem [shape: f32[16,32], index: 1, kind: input, shape index: {}]
  %s2 = inlined_call_operand.vmem [shape: f32[16,1], index: 2, kind: input, shape index: {}]
  %s3 = inlined_call_operand.vmem [shape: f32[32,16], index: 3, kind: input, shape index: {}]
  %s4 = inlined_call_operand.vmem [shape: f32[12,1], index: 4, kind: input, shape index: {}]
  %s5 = inlined_call_operand.vmem [shape: f32[24,12], index: 5, kind: input, shape index: {}]
  %s6 = inlined_call_operand.vmem [shape: f32[8,1], index: 6, kind: input, shape index: {}]
  %s7 = inlined_call_operand.vmem [shape: f32[16,8], index: 7, kind: input, shape index: {}]
  %s8 = inlined_call_operand.vmem [shape: f32[16,1], index: 8, kind: input, shape index: {}]
  %s9 = inlined_call_operand.hbm [shape: f32[16,128], index: 9, kind: output, shape index: {}]
  %s10 = sld [smem:[#allocation0]]
  $region46: #{tpu_custom_call.1} parent=0
    _
  %s12 = ssub.s32 1, %s10
  %s13 = scalar_select 0, %s12, %s10
  $region1: #{tpu_custom_call.1} parent=0
    #allocation2 [shape = 'u8[8192]{0}', space=vmem, size = 0x2000, scoped, tag = 'output window, operand 0, single buffered']
    #allocation3 [shape = 's32[1]{0}', space=sflag, size = 0x4, scoped, tag = 'scoped memory for tpu_custom_call.1']
    %14 = vsyncpa [#allocation3], 0
    // Predicated region
    $region2: #{tpu_custom_call.1} parent=1 // pred_check
      _
    $region3: #{tpu_custom_call.1} parent=1 // pred_check_branch
      %16 = sbr.rel (0) target = $region5
    $region4: #{tpu_custom_call.1} parent=1 // pred_region
      _
    $region5: #{tpu_custom_call.1} parent=1 // pred_fallthru
      _
    // Predicated region
    $region6: #{tpu_custom_call.1} parent=1 // pred_check
      _
    $region7: #{tpu_custom_call.1} parent=1 // pred_check_branch
      %18 = sbr.rel (0) target = $region9
    $region8: #{tpu_custom_call.1} parent=1 // pred_region
      _
    $region9: #{tpu_custom_call.1} parent=1 // pred_fallthru
      _
    // Predicated region
    $region10: #{tpu_custom_call.1} parent=1 // pred_check
      _
    $region11: #{tpu_custom_call.1} parent=1 // pred_check_branch
      %20 = sbr.rel (0) target = $region13
    $region12: #{tpu_custom_call.1} parent=1 // pred_region
      _
    $region13: #{tpu_custom_call.1} parent=1 // pred_fallthru
      _
    // Predicated region
    $region14: #{tpu_custom_call.1} parent=1 // pred_check
      _
    $region15: #{tpu_custom_call.1} parent=1 // pred_check_branch
      %22 = sbr.rel (0) target = $region17
    $region16: #{tpu_custom_call.1} parent=1 // pred_region
      _
    $region17: #{tpu_custom_call.1} parent=1 // pred_fallthru
      _
    // Predicated region
    $region18: #{tpu_custom_call.1} parent=1 // pred_check
      _
    $region19: #{tpu_custom_call.1} parent=1 // pred_check_branch
      %24 = sbr.rel (0) target = $region21
    $region20: #{tpu_custom_call.1} parent=1 // pred_region
      _
    $region21: #{tpu_custom_call.1} parent=1 // pred_fallthru
      _
    // Predicated region
    $region22: #{tpu_custom_call.1} parent=1 // pred_check
      _
    $region23: #{tpu_custom_call.1} parent=1 // pred_check_branch
      %26 = sbr.rel (0) target = $region25
    $region24: #{tpu_custom_call.1} parent=1 // pred_region
      _
    $region25: #{tpu_custom_call.1} parent=1 // pred_fallthru
      _
    // Predicated region
    $region26: #{tpu_custom_call.1} parent=1 // pred_check
      _
    $region27: #{tpu_custom_call.1} parent=1 // pred_check_branch
      %28 = sbr.rel (0) target = $region29
    $region28: #{tpu_custom_call.1} parent=1 // pred_region
      _
    $region29: #{tpu_custom_call.1} parent=1 // pred_fallthru
      _
    // Predicated region
    $region30: #{tpu_custom_call.1} parent=1 // pred_check
      _
    $region31: #{tpu_custom_call.1} parent=1 // pred_check_branch
      %30 = sbr.rel (0) target = $region33
    $region32: #{tpu_custom_call.1} parent=1 // pred_region
      _
    $region33: #{tpu_custom_call.1} parent=1 // pred_fallthru
      _
    // Predicated region
    $region34: #{tpu_custom_call.1} parent=1 // pred_check
      _
    $region35: #{tpu_custom_call.1} parent=1 // pred_check_branch
      %32 = sbr.rel (0) target = $region37
    $region36: #{tpu_custom_call.1} parent=1 // pred_region
      _
    $region37: #{tpu_custom_call.1} parent=1 // pred_fallthru
      _
    %v33 = vld [vmem:[%s0] sm:$0xff]
    %v34 = vld [vmem:[%s0 + $0x8] sm:$0xff]
    %v35 = vld [vmem:[%s0 + $0x10] sm:$0xff]
    %v36 = vld [vmem:[%s0 + $0x18] sm:$0xff]
    %v37 = vld [vmem:[%s1] sm:$0xff]
    %v38 = vld [vmem:[%s1 + $0x8] sm:$0xff]
    %v39 = vld [vmem:[%s2] sm:$0xff]
    %v40 = vld [vmem:[%s2 + $0x8] sm:$0xff]
    %42 = vset.pattern.permute.xlu0 0
    %43 = vperm.xlu0 %42, %v39
    %v44 = vpop.permute.xlu0 %43
    %47 = vset.pattern.permute.xlu0 0
    %48 = vperm.xlu0 %47, %v40
    %v49 = vpop.permute.xlu0 %48
    %vm51 = vcmask 261120
    %v53 = vsel %vm51, %v37, 0
    %v56 = vsel %vm51, %v38, 0
    %58 = vmatpush.msra.mxu0 0.0
    %59 = vmatpush.msra.mxu0 0.0
    %60 = vmatpush.msra.mxu0 0.0
    %61 = vmatpush.msra.mxu0 0.0
    %62 = vmatpush.msra.mxu0 0.0
    %63 = vmatpush.msra.mxu0 0.0
    %64 = vmatpush.msra.mxu0 0.0
    %65 = vmatpush.msra.mxu0 0.0
    %66 = vmatpush.msra.mxu0 0.0
    %67 = vmatpush.msra.mxu0 0.0
    %68 = vmatpush.msra.mxu0 0.0
    %69 = vmatpush.msra.mxu0 0.0
    %70 = vmatpush.msra.mxu0 %v36
    %71 = vmatpush.msra.mxu0 %v35
    %72 = vmatpush.msra.mxu0 %v34
    %73 = vmatpush.msra.mxu0 %v33
    %74 = vmatmul.f32.gmra.mxu0 %v53
    %v75 = vpop.f32.mrf.mxu0
    %v76 = vadd.f32 %v44, %v75
    %77 = vmatmul.f32.gmra.mxu0 %v56
    %v78 = vpop.f32.mrf.mxu0
    %v79 = vadd.f32 %v49, %v78
    %80 = vdwg.mxu0
    %v81 = vmax.f32 %v76, 0.0
    %v82 = vmax.f32 %v79, 0.0
    %v83 = vld [vmem:[%s3] sm:$0xff]
    %v84 = vld [vmem:[%s3 + $0x8] sm:$0xff]
    %v85 = vld [vmem:[%s3 + $0x10] sm:$0xff]
    %v86 = vld [vmem:[%s3 + $0x18] sm:$0xff]
    %vm87 = vcmask 130048
    %v89 = vsel %vm87, %v83, 0
    %v92 = vsel %vm87, %v84, 0
    %v95 = vsel %vm87, %v85, 0
    %v98 = vsel %vm87, %v86, 0
    %100 = vmatpush.msra.mxu0 0.0
    %101 = vmatpush.msra.mxu0 0.0
    %102 = vmatpush.msra.mxu0 0.0
    %103 = vmatpush.msra.mxu0 0.0
    %104 = vmatpush.msra.mxu0 0.0
    %105 = vmatpush.msra.mxu0 0.0
    %106 = vmatpush.msra.mxu0 0.0
    %107 = vmatpush.msra.mxu0 0.0
    %108 = vmatpush.msra.mxu0 0.0
    %109 = vmatpush.msra.mxu0 0.0
    %110 = vmatpush.msra.mxu0 0.0
    %111 = vmatpush.msra.mxu0 0.0
    %112 = vmatpush.msra.mxu0 0.0
    %113 = vmatpush.msra.mxu0 0.0
    %114 = vmatpush.msra.mxu0 %v82
    %115 = vmatpush.msra.mxu0 %v81
    %116 = vmatmul.f32.gmra.mxu0 %v89
    %v117 = vpop.f32.mrf.mxu0
    %v118 = vadd.f32 0.0, %v117
    %119 = vmatmul.f32.gmra.mxu0 %v92
    %v120 = vpop.f32.mrf.mxu0
    %v121 = vadd.f32 0.0, %v120
    %122 = vmatmul.f32.gmra.mxu0 %v95
    %v123 = vpop.f32.mrf.mxu0
    %v124 = vadd.f32 0.0, %v123
    %125 = vmatmul.f32.gmra.mxu0 %v98
    %v126 = vpop.f32.mrf.mxu0
    %v127 = vadd.f32 0.0, %v126
    %128 = vdwg.mxu0
    %v129 = vld [vmem:[%s4] sm:$0xff]
    %v130 = vld [vmem:[%s4 + $0x8] sm:$0xf]
    %132 = vset.pattern.permute.xlu0 0
    %133 = vperm.xlu0 %132, %v129
    %v134 = vpop.permute.xlu0 %133
    %137 = vset.pattern.permute.xlu0 0
    %138 = vperm.xlu0 %137, %v130
    %v139 = vpop.permute.xlu0 %138
    %v141 = vadd.f32 %v118, %v134
    %v142 = vadd.f32 %v121, %v139
    %v143 = vmax.f32 %v141, 0.0
    %v144 = vmax.f32 %v142, 0.0
    %v145 = vld [vmem:[%s5] sm:$0xff]
    %v146 = vld [vmem:[%s5 + $0x8] sm:$0xff]
    %v147 = vld [vmem:[%s5 + $0x10] sm:$0xff]
    %vm148 = vcmask 97280
    %v150 = vsel %vm148, %v145, 0
    %v153 = vsel %vm148, %v146, 0
    %v156 = vsel %vm148, %v147, 0
    %vm158 = vcmask 1043456
    %v160 = vsel %vm158, %v144, 0
    %162 = vmatpush.msra.mxu0 0.0
    %163 = vmatpush.msra.mxu0 0.0
    %164 = vmatpush.msra.mxu0 0.0
    %165 = vmatpush.msra.mxu0 0.0
    %166 = vmatpush.msra.mxu0 0.0
    %167 = vmatpush.msra.mxu0 0.0
    %168 = vmatpush.msra.mxu0 0.0
    %169 = vmatpush.msra.mxu0 0.0
    %170 = vmatpush.msra.mxu0 0.0
    %171 = vmatpush.msra.mxu0 0.0
    %172 = vmatpush.msra.mxu0 0.0
    %173 = vmatpush.msra.mxu0 0.0
    %174 = vmatpush.msra.mxu0 0.0
    %175 = vmatpush.msra.mxu0 0.0
    %176 = vmatpush.msra.mxu0 %v160
    %177 = vmatpush.msra.mxu0 %v143
    %178 = vmatmul.f32.gmra.mxu0 %v150
    %v179 = vpop.f32.mrf.mxu0
    %v180 = vadd.f32 0.0, %v179
    %181 = vmatmul.f32.gmra.mxu0 %v153
    %v182 = vpop.f32.mrf.mxu0
    %v183 = vadd.f32 0.0, %v182
    %184 = vmatmul.f32.gmra.mxu0 %v156
    %v185 = vpop.f32.mrf.mxu0
    %v186 = vadd.f32 0.0, %v185
    %187 = vdwg.mxu0
    %v188 = vld [vmem:[%s6] sm:$0xff]
    %190 = vset.pattern.permute.xlu0 0
    %191 = vperm.xlu0 %190, %v188
    %v192 = vpop.permute.xlu0 %191
    %v194 = vadd.f32 %v180, %v192
    %v195 = vmax.f32 %v194, 0.0
    %v196 = vadd.f32 %v124, %v183
    %v197 = vadd.f32 %v127, %v186
    %v198 = vld [vmem:[%s7] sm:$0xff]
    %v199 = vld [vmem:[%s7 + $0x8] sm:$0xff]
    %vm200 = vcmask 64512
    %v202 = vsel %vm200, %v198, 0
    %v205 = vsel %vm200, %v199, 0
    %207 = vmatpush.msra.mxu0 0.0
    %208 = vmatpush.msra.mxu0 0.0
    %209 = vmatpush.msra.mxu0 0.0
    %210 = vmatpush.msra.mxu0 0.0
    %211 = vmatpush.msra.mxu0 0.0
    %212 = vmatpush.msra.mxu0 0.0
    %213 = vmatpush.msra.mxu0 0.0
    %214 = vmatpush.msra.mxu0 0.0
    %215 = vmatpush.msra.mxu0 0.0
    %216 = vmatpush.msra.mxu0 0.0
    %217 = vmatpush.msra.mxu0 0.0
    %218 = vmatpush.msra.mxu0 0.0
    %219 = vmatpush.msra.mxu0 0.0
    %220 = vmatpush.msra.mxu0 0.0
    %221 = vmatpush.msra.mxu0 0.0
    %222 = vmatpush.msra.mxu0 %v195
    %223 = vmatmul.f32.gmra.mxu0 %v202
    %v224 = vpop.f32.mrf.mxu0
    %v225 = vadd.f32 0.0, %v224
    %226 = vmatmul.f32.gmra.mxu0 %v205
    %v227 = vpop.f32.mrf.mxu0
    %v228 = vadd.f32 0.0, %v227
    %229 = vdwg.mxu0
    %v230 = vadd.f32 %v196, %v225
    %v231 = vadd.f32 %v197, %v228
    %v232 = vld [vmem:[%s8] sm:$0xff]
    %v233 = vld [vmem:[%s8 + $0x8] sm:$0xff]
    %235 = vset.pattern.permute.xlu0 0
    %236 = vperm.xlu0 %235, %v232
    %v237 = vpop.permute.xlu0 %236
    %240 = vset.pattern.permute.xlu0 0
    %241 = vperm.xlu0 %240, %v233
    %v242 = vpop.permute.xlu0 %241
    %v244 = vadd.f32 %v230, %v237
    %v245 = vadd.f32 %v231, %v242
    %246 = vst [vmem:[#allocation2] sm:$0xff] %v244
    %247 = vst [vmem:[#allocation2 + $0x8] sm:$0xff] %v245
    // Predicated region
    $region38: #{tpu_custom_call.1} parent=1 // pred_check
      _
    $region39: #{tpu_custom_call.1} parent=1 // pred_check_branch
      %249 = sbr.rel (0) target = $region41
    $region40: #{tpu_custom_call.1} parent=1 // pred_region
      %251 = vsyncadd [#allocation3], 0
      %s252 = sshll.u32 [#allocation2], 4
      %s253 = int_to_ptr.vmem [resolvable:$true] %s252
      %s254 = sshll.u32 %s9, 4
      %s255 = int_to_ptr.hbm [resolvable:$true] %s254
      %260 = dma.vmem_to_hbm [thread:$0]  %s253, 256, %s255, [#allocation3], 128, 128, 8
    $region41: #{tpu_custom_call.1} parent=1 // pred_fallthru
      _
    // Predicated region
    $region42: #{tpu_custom_call.1} parent=1 // pred_check
      _
    $region43: #{tpu_custom_call.1} parent=1 // pred_check_branch
      %262 = sbr.rel (0) target = $region45
    $region44: #{tpu_custom_call.1} parent=1 // pred_region
      %264 = dma.done [#allocation3], 256
    $region45: #{tpu_custom_call.1} parent=1 // pred_fallthru
      _
    %265 = vsyncpa [#allocation3], 1

</llo_original>
